<compile_context>
chip_gen: v7x
topology: tpu7x:2x2x1
jax: 0.10.0
libtpu: 0.0.40
codegen_flags: <defaults>
</compile_context>

<pallas_src>
import functools

import jax
import jax.numpy as jnp
from jax.experimental import pallas as pl
from jax.experimental.pallas import tpu as pltpu


def _round_up(x, m):
    return (x + m - 1) // m * m


def _rmsnorm_kernel(x_ref, w_ref, o_ref, *, eps, inv_h):
    # No residual: residual_out == input, handled in the wrapper (no write here).
    h32 = x_ref[...].astype(jnp.float32)
    var = jnp.sum(h32 * h32, axis=-1, keepdims=True) * inv_h
    inv = jax.lax.rsqrt(var + eps)
    normed = (h32 * inv).astype(o_ref.dtype)   # cast first (matches torch)
    o_ref[...] = w_ref[...] * normed           # weight * normed in weight dtype


def _rmsnorm_residual_kernel(x_ref, res_ref, w_ref, o_ref, r_ref, *, eps, inv_h):
    # hidden_states += residual (in the input dtype, matching torch in-place add)
    h = x_ref[...] + res_ref[...]
    r_ref[...] = h.astype(r_ref.dtype)
    h32 = h.astype(jnp.float32)
    var = jnp.sum(h32 * h32, axis=-1, keepdims=True) * inv_h
    inv = jax.lax.rsqrt(var + eps)
    normed = (h32 * inv).astype(o_ref.dtype)
    o_ref[...] = w_ref[...] * normed


def _pick_tile(S, H, n_io, itemsize):
    """Row-tile size + VMEM limit that is safe on v5e/v6e/v7x.

    Live VMEM ~= 2 (double-buffering) * n_io arrays * TS * H * itemsize.
    A ~16 MiB budget for the streamed arrays already saturates HBM BW while
    fitting every generation's scoped-VMEM limits (with the explicit raise).
    """
    budget = 16 << 20
    ts = budget // max(1, 2 * n_io * H * itemsize)
    ts = max(8, min(512, (int(ts) // 8) * 8))          # multiple of 8 sublanes
    ts = min(ts, _round_up(S, 8))
    vmem = 2 * n_io * ts * H * itemsize + (4 << 20)    # + headroom (weight, misc)
    vmem = int(max(16 << 20, min(48 << 20, vmem)))     # 48 MiB fits v7x's 64 MiB
    return ts, vmem


def mixtral_rmsnorm(hidden_states, weight, residual=None, eps=1e-6):
    """RMSNorm forward. Returns (normed_hidden_states, residual_out)."""
    orig_shape = hidden_states.shape
    H = orig_shape[-1]

    # Flatten any leading dims to rows so the last (lane) dim stays dense.
    x = hidden_states.reshape(-1, H)
    S = x.shape[0]
    res2d = None if residual is None else residual.reshape(-1, H)
    w2d = weight.reshape(1, H)

    inv_h = 1.0 / float(H)
    itemsize = jnp.dtype(x.dtype).itemsize
    n_io = 2 if residual is None else 4                # streamed [S,H] arrays
    TS, vmem_limit = _pick_tile(S, H, n_io, itemsize)

    # Pad rows so the grid tiles evenly; padded (zero) rows are sliced off.
    S_pad = _round_up(S, TS)
    if S_pad != S:
        pad = S_pad - S
        x = jnp.pad(x, ((0, pad), (0, 0)))
        if res2d is not None:
            res2d = jnp.pad(res2d, ((0, pad), (0, 0)))

    grid = (S_pad // TS,)
    tile_spec = pl.BlockSpec((TS, H), lambda i: (i, 0))
    w_spec = pl.BlockSpec((1, H), lambda i: (0, 0))    # resident across grid steps
    cparams = pltpu.CompilerParams(
        dimension_semantics=("parallel",),             # lets v7x use both TCs
        vmem_limit_bytes=vmem_limit,
    )

    if residual is None:
        out = pl.pallas_call(
            functools.partial(_rmsnorm_kernel, eps=eps, inv_h=inv_h),
            out_shape=jax.ShapeDtypeStruct((S_pad, H), weight.dtype),
            grid_spec=pltpu.PrefetchScalarGridSpec(
                num_scalar_prefetch=0,
                grid=grid,
                in_specs=[tile_spec, w_spec],
                out_specs=tile_spec,
            ),
            compiler_params=cparams,
        )(x, w2d)
        out = out[:S].reshape(orig_shape)
        # residual_out is exactly the (un-normalized) input: no extra HBM write.
        return out, hidden_states

    out, res_out = pl.pallas_call(
        functools.partial(_rmsnorm_residual_kernel, eps=eps, inv_h=inv_h),
        out_shape=(
            jax.ShapeDtypeStruct((S_pad, H), weight.dtype),         # normed
            jax.ShapeDtypeStruct((S_pad, H), hidden_states.dtype),  # residual out
        ),
        grid_spec=pltpu.PrefetchScalarGridSpec(
            num_scalar_prefetch=0,
            grid=grid,
            in_specs=[tile_spec, tile_spec, w_spec],
            out_specs=[tile_spec, tile_spec],
        ),
        compiler_params=cparams,
    )(x, res2d, w2d)
    out = out[:S].reshape(orig_shape)
    res_out = res_out[:S].reshape(orig_shape)
    return out, res_out


def _reference(hidden_states, weight, residual=None, eps=1e-6):
    h = hidden_states
    if residual is not None:
        h = h + residual
    res = h
    h32 = h.astype(jnp.float32)
    var = jnp.mean(h32 * h32, axis=-1, keepdims=True)
    normed = (h32 * jax.lax.rsqrt(var + eps)).astype(weight.dtype)
    return weight * normed, res


if __name__ == "__main__":
    key = jax.random.PRNGKey(0)
    k1, k2, k3 = jax.random.split(key, 3)

    # --- Small bf16 test (seq=8, hidden=32), both paths --------------------
    seq, hidden = 8, 32
    dtype = jnp.bfloat16

    x = jax.random.normal(k1, (seq, hidden), dtype=jnp.float32).astype(dtype)
    res = jax.random.normal(k2, (seq, hidden), dtype=jnp.float32).astype(dtype)
    weight = (1.0 + 0.01 * jax.random.normal(k3, (hidden,), dtype=jnp.float32)).astype(dtype)

    out1, r1 = mixtral_rmsnorm(x, weight, residual=None, eps=1e-6)
    jax.block_until_ready((out1, r1))
    ref_out1, ref_r1 = _reference(x, weight, None, 1e-6)
    assert jnp.allclose(out1.astype(jnp.float32), ref_out1.astype(jnp.float32),
                        atol=2e-2, rtol=2e-2)
    assert jnp.allclose(r1.astype(jnp.float32), ref_r1.astype(jnp.float32))

    out2, r2 = mixtral_rmsnorm(x, weight, residual=res, eps=1e-6)
    jax.block_until_ready((out2, r2))
    ref_out2, ref_r2 = _reference(x, weight, res, 1e-6)
    assert jnp.allclose(out2.astype(jnp.float32), ref_out2.astype(jnp.float32),
                        atol=2e-2, rtol=2e-2)
    assert jnp.allclose(r2.astype(jnp.float32), ref_r2.astype(jnp.float32))

    # --- Odd row count (exercises padding path), f32 -----------------------
    seq3 = 13
    k4, k5, k6 = jax.random.split(jax.random.PRNGKey(1), 3)
    x3 = jax.random.normal(k4, (seq3, hidden), dtype=jnp.float32)
    res3 = jax.random.normal(k5, (seq3, hidden), dtype=jnp.float32)
    w3 = 1.0 + 0.01 * jax.random.normal(k6, (hidden,), dtype=jnp.float32)

    out3, r3 = mixtral_rmsnorm(x3, w3, residual=res3, eps=1e-6)
    jax.block_until_ready((out3, r3))
    ref_out3, ref_r3 = _reference(x3, w3, res3, 1e-6)
    assert jnp.allclose(out3, ref_out3, atol=1e-5, rtol=1e-5)
    assert jnp.allclose(r3, ref_r3, atol=1e-6, rtol=1e-6)

    print("KERNEL_OK")
</pallas_src>

<mosaic_0001>
module attributes {stable_mosaic.version = 11 : i64} {
  func.func @_rmsnorm_kernel(%arg0: i32, %arg1: memref<8x32xbf16, #tpu.memory_space<vmem>>, %arg2: memref<1x32xbf16, #tpu.memory_space<vmem>>, %arg3: memref<8x32xbf16, #tpu.memory_space<vmem>>) attributes {dimension_semantics = [#tpu.dimension_semantics<parallel>], iteration_bounds = array<i64: 1>, scalar_prefetch = 0 : i64, scratch_operands = 0 : i64, tpu.core_type = #tpu.core_type<tc>, window_params = [{transform_indices = @transform_0, window_bounds = array<i64: 8, 32>}, {pipeline_mode = #tpu.pipeline_mode<synchronous>, transform_indices = @transform_1, window_bounds = array<i64: 1, 32>}, {transform_indices = @transform_2, window_bounds = array<i64: 8, 32>}]} {
    %c0 = arith.constant 0 : index
    %c0_0 = arith.constant 0 : index
    %0 = vector.load %arg1[%c0, %c0_0] : memref<8x32xbf16, #tpu.memory_space<vmem>>, vector<8x32xbf16>
    %1 = arith.extf %0 : vector<8x32xbf16> to vector<8x32xf32>
    %2 = arith.mulf %1, %1 : vector<8x32xf32>
    %cst = arith.constant dense<0.000000e+00> : vector<8xf32>
    %3 = vector.multi_reduction <add>, %2, %cst [1] : vector<8x32xf32> to vector<8xf32>
    %4 = vector.shape_cast %3 : vector<8xf32> to vector<8x1xf32>
    %cst_1 = arith.constant 3.125000e-02 : f32
    %5 = vector.broadcast %cst_1 : f32 to vector<8x1xf32>
    %6 = arith.mulf %4, %5 : vector<8x1xf32>
    %cst_2 = arith.constant 9.99999997E-7 : f32
    %7 = vector.broadcast %cst_2 : f32 to vector<8x1xf32>
    %8 = arith.addf %6, %7 : vector<8x1xf32>
    %9 = math.rsqrt %8 : vector<8x1xf32>
    %10 = vector.broadcast %9 : vector<8x1xf32> to vector<8x32xf32>
    %11 = arith.mulf %1, %10 : vector<8x32xf32>
    %12 = arith.truncf %11 : vector<8x32xf32> to vector<8x32xbf16>
    %c0_3 = arith.constant 0 : index
    %c0_4 = arith.constant 0 : index
    %13 = vector.load %arg2[%c0_3, %c0_4] : memref<1x32xbf16, #tpu.memory_space<vmem>>, vector<1x32xbf16>
    %14 = vector.broadcast %13 : vector<1x32xbf16> to vector<8x32xbf16>
    %15 = arith.mulf %14, %12 : vector<8x32xbf16>
    %c0_5 = arith.constant 0 : index
    %c0_6 = arith.constant 0 : index
    %16 = vector.load %arg3[%c0_5, %c0_6] : memref<8x32xbf16, #tpu.memory_space<vmem>>, vector<8x32xbf16>
    tpu.vector_store %arg3[%c0_5, %c0_6], %15 {strides = array<i32>} : memref<8x32xbf16, #tpu.memory_space<vmem>>, vector<8x32xbf16>,
    return
  }
  func.func @transform_0(%arg0: i32) -> (i32, i32) {
    %c0_i32 = arith.constant 0 : i32
    %c0_i32_0 = arith.constant 0 : i32
    return %arg0, %c0_i32 : i32, i32
  }
  func.func @transform_1(%arg0: i32) -> (i32, i32) {
    %c0_i32 = arith.constant 0 : i32
    %c0_i32_0 = arith.constant 0 : i32
    %c0_i32_1 = arith.constant 0 : i32
    return %c0_i32, %c0_i32_0 : i32, i32
  }
  func.func @transform_2(%arg0: i32) -> (i32, i32) {
    %c0_i32 = arith.constant 0 : i32
    %c0_i32_0 = arith.constant 0 : i32
    return %arg0, %c0_i32 : i32, i32
  }
}

</mosaic_0001>

<llo_original>
// kernel: tpu_custom_call.1
$region0: #{tpu_custom_call.1}
  #allocation0 [shape = 'u32[]', space=smem, size = 0x4, offset = 0x4, fixed_abs, tag = 'smem constant byte address 0x4 - core index']
  #allocation1 [shape = 'u32[144,128]{1,0:T(1,128)}', space=vmem, size = 0x12000, scoped, tag = 'internal scratch']
  %s0 = inlined_call_operand.hbm [shape: bf16[8,32], index: 0, kind: input, shape index: {}]
  %s1 = inlined_call_operand.vmem [shape: bf16[1,32], index: 1, kind: input, shape index: {}]
  %s2 = inlined_call_operand.hbm [shape: bf16[8,32], index: 2, kind: output, shape index: {}]
  %s3 = sld [smem:[#allocation0]]
  $region22: #{tpu_custom_call.1} parent=0
    _
  %s5 = ssub.s32 1, %s3
  %s6 = scalar_select 0, %s5, %s3
  $region1: #{tpu_custom_call.1} parent=0
    #allocation2 [shape = 'u8[2048]{0}', space=vmem, size = 0x800, scoped, tag = 'input window, operand 0, single buffered']
    #allocation3 [shape = 's32[1]{0}', space=sflag, size = 0x4, scoped, tag = 'scoped memory for tpu_custom_call.1']
    #allocation4 [shape = 's32[1]{0}', space=sflag, size = 0x4, scoped, tag = 'scoped memory for tpu_custom_call.1']
    #allocation5 [shape = 'u8[2048]{0}', space=vmem, size = 0x800, scoped, tag = 'output window, operand 0, single buffered']
    %7 = vsyncpa [#allocation3], 0
    %8 = vsyncpa [#allocation4], 0
    // Predicated region
    $region2: #{tpu_custom_call.1} parent=1 // pred_check
      _
    $region3: #{tpu_custom_call.1} parent=1 // pred_check_branch
      %10 = sbr.rel (0) target = $region5
    $region4: #{tpu_custom_call.1} parent=1 // pred_region
      %s12 = ssub.s32 64, 64
      %13 = vsyncadd [#allocation3], %s12
      %s15 = sshll.u32 [#allocation2], 4
      %s16 = int_to_ptr.vmem [resolvable:$true] %s15
      %18 = dma.hbm_to_vmem [thread:$0]  %s0, 64, %s16, [#allocation3]
    $region5: #{tpu_custom_call.1} parent=1 // pred_fallthru
      _
    // Predicated region
    $region6: #{tpu_custom_call.1} parent=1 // pred_check
      _
    $region7: #{tpu_custom_call.1} parent=1 // pred_check_branch
      %20 = sbr.rel (0) target = $region9
    $region8: #{tpu_custom_call.1} parent=1 // pred_region
      _
    $region9: #{tpu_custom_call.1} parent=1 // pred_fallthru
      _
    // Predicated region
    $region10: #{tpu_custom_call.1} parent=1 // pred_check
      _
    $region11: #{tpu_custom_call.1} parent=1 // pred_check_branch
      %22 = sbr.rel (0) target = $region13
    $region12: #{tpu_custom_call.1} parent=1 // pred_region
      %23 = dma.done [#allocation3], 64
    $region13: #{tpu_custom_call.1} parent=1 // pred_fallthru
      _
    %v24 = vld [vmem:[#allocation2] sm:$0xf]
    %v25 = vunpack.c.l.bf16 %v24
    %v26 = vmul.f32 %v25, %v25
    %vm27 = vcmask 261120
    %v28 = vsel %vm27, %v26, 0.0
    %29 = vadd.xlane.f32.xlu0 %v28
    %v30 = vpop.xlane.xlu0 %29
    %v31 = vmul.f32 %v30, 0.03125
    %v32 = vadd.f32 %v31, 1e-06
    %v33 = vrsqrt.pop %v32
    %v34 = vmul.f32 %v25, %v33
    %v35 = vpack.c.bf16 %v34, %v34
    %v36 = vld [vmem:[%s1] sm:$0x1]
    %v38 = vpack.i.b16 %v36, %v36
    %v40 = vlaneseq
    %v41 = vshrl.u32 %v40, 7
    %v42 = vsub.s32 0, %v41
    %v43 = vrot.slane %v38, %v42
    %v44 = vmul.bf16 %v43, %v35
    %vm45 = vcmask 257024
    %46 = vst.msk [vmem:[#allocation5] sm:$0xf] %vm45, %v44
    // Predicated region
    $region14: #{tpu_custom_call.1} parent=1 // pred_check
      _
    $region15: #{tpu_custom_call.1} parent=1 // pred_check_branch
      %48 = sbr.rel (0) target = $region17
    $region16: #{tpu_custom_call.1} parent=1 // pred_region
      %s50 = ssub.s32 64, 64
      %51 = vsyncadd [#allocation4], %s50
      %s53 = sshll.u32 [#allocation5], 4
      %s54 = int_to_ptr.vmem [resolvable:$true] %s53
      %56 = dma.vmem_to_hbm [thread:$0]  %s54, 64, %s2, [#allocation4]
    $region17: #{tpu_custom_call.1} parent=1 // pred_fallthru
      _
    // Predicated region
    $region18: #{tpu_custom_call.1} parent=1 // pred_check
      _
    $region19: #{tpu_custom_call.1} parent=1 // pred_check_branch
      %58 = sbr.rel (0) target = $region21
    $region20: #{tpu_custom_call.1} parent=1 // pred_region
      %59 = dma.done [#allocation4], 64
    $region21: #{tpu_custom_call.1} parent=1 // pred_fallthru
      _
    %60 = vsyncpa [#allocation3], 1
    %61 = vsyncpa [#allocation4], 1

</llo_original>
